<compile_context>
chip_gen: v7x
topology: tpu7x:2x2x1
jax: 0.10.0
libtpu: 0.0.40
codegen_flags: <defaults>
</compile_context>

<pallas_src>
import jax
import jax.numpy as jnp
from jax.experimental import pallas as pl
from jax.experimental.pallas import tpu as pltpu

LANE = 128
SUBLANE = 8


def mlp_kernel(xyt_ref, w1_ref, b1_ref, w2_ref, b2_ref, w3_ref, b3_ref,
               w4_ref, b4_ref, out_ref):
    # xyt_ref: (8, TILE_N) -- rows 0..2 = x, y, t; rows 3..7 are zero padding.
    # w1_ref : (H0, 8)     -- columns 3..7 are zero, so pad rows contribute nothing.
    # All matmuls keep the batch on the MXU output (lane) dimension.
    h = jnp.tanh(jnp.dot(w1_ref[...], xyt_ref[...],
                         preferred_element_type=jnp.float32) + b1_ref[...])
    h = jnp.tanh(jnp.dot(w2_ref[...], h,
                         preferred_element_type=jnp.float32) + b2_ref[...])
    h = jnp.tanh(jnp.dot(w3_ref[...], h,
                         preferred_element_type=jnp.float32) + b3_ref[...])
    out_ref[...] = (jnp.dot(w4_ref[...], h,
                            preferred_element_type=jnp.float32)
                    + b4_ref[...]).astype(out_ref.dtype)


def _round_lane(v):
    return ((v + LANE - 1) // LANE) * LANE


def mynet1_forward(x, y, t, params, *, tile_n=16384):
    """x, y, t: [N, 1] float32.  Returns [N, D_out] float32 (MyNet1.forward semantics)."""
    (w1, b1), (w2, b2), (w3, b3), (w4, b4) = params
    n = x.shape[0]
    d_out = w4.shape[0]
    h0, h1, h2 = w1.shape[0], w2.shape[0], w3.shape[0]
    h_max = max(h0, h1, h2)

    n_lane = max(LANE, _round_lane(n))

    # ---- tile_n selection -------------------------------------------------
    # (a) lane aligned (the (8,128) BlockSpec rule), (b) capped by a ~32 MiB VMEM
    # working-set budget, (c) >= 2 grid steps whenever the batch allows it so the
    # "parallel" axis shards across both TensorCores on v7x.
    vmem_budget = 32 * 1024 * 1024
    per_col_bytes = 4 * (2 * SUBLANE + 2 * d_out + 4 * h_max)  # conservative estimate
    tile_cap = max(LANE, (vmem_budget // per_col_bytes) // LANE * LANE)

    tile_n = max(LANE, _round_lane(tile_n))
    tile_n = min(tile_n, tile_cap, n_lane)
    if LANE < n_lane <= tile_n:                 # grid would collapse to 1 step: split
        tile_n = _round_lane((n_lane + 1) // 2)
    n_pad = ((n + tile_n - 1) // tile_n) * tile_n
    grid = (n_pad // tile_n,)

    # ---- single fused input slab: [8, N_pad], rows 0..2 = x, y, t ----------
    xyt = jnp.pad(jnp.concatenate([x, y, t], axis=1).T,        # [3, N]
                  ((0, SUBLANE - 3), (0, n_pad - n)))           # [8, N_pad]
    w1p = jnp.pad(w1, ((0, 0), (0, SUBLANE - w1.shape[1])))     # (H0, 8), zero cols

    in_block = pl.BlockSpec((SUBLANE, tile_n), lambda i: (0, i))

    def const_spec(arr):  # whole array, same block every step -> stays VMEM-resident
        return pl.BlockSpec(arr.shape, lambda i: (0, 0))

    flops = 2 * n_pad * (SUBLANE * h0 + h0 * h1 + h1 * h2 + h2 * d_out)
    transcendentals = n_pad * (h0 + h1 + h2)
    bytes_accessed = 4 * (SUBLANE * n_pad + d_out * n_pad
                          + w1p.size + b1.size + w2.size + b2.size
                          + w3.size + b3.size + w4.size + b4.size)

    out_t = pl.pallas_call(
        mlp_kernel,
        out_shape=jax.ShapeDtypeStruct((d_out, n_pad), jnp.float32),
        grid=grid,
        in_specs=[in_block,
                  const_spec(w1p), const_spec(b1),
                  const_spec(w2), const_spec(b2),
                  const_spec(w3), const_spec(b3),
                  const_spec(w4), const_spec(b4)],
        out_specs=pl.BlockSpec((d_out, tile_n), lambda i: (0, i)),
        compiler_params=pltpu.CompilerParams(
            dimension_semantics=("parallel",),
            vmem_limit_bytes=48 * 1024 * 1024),
        cost_estimate=pl.CostEstimate(
            flops=flops,
            transcendentals=transcendentals,
            bytes_accessed=bytes_accessed),
    )(xyt, w1p, b1, w2, b2, w3, b3, w4, b4)

    # Preserve MyNet1.forward output shape [N, D_out].  A consumer that can accept
    # [D_out, N] should take out_t[:, :n] directly and skip this transpose pass.
    return out_t[:, :n].T


def init_params(key, d_in, hidden, d_out):
    """PyTorch-Linear-like uniform fan-in init; weights (out, in), biases (out, 1)."""
    dims = [d_in] + list(hidden) + [d_out]
    params = []
    for i in range(len(dims) - 1):
        key, kw, kb = jax.random.split(key, 3)
        fan_in = dims[i]
        bound = 1.0 / (fan_in ** 0.5)
        w = jax.random.uniform(kw, (dims[i + 1], dims[i]), jnp.float32, -bound, bound)
        b = jax.random.uniform(kb, (dims[i + 1], 1), jnp.float32, -bound, bound)
        params.append((w, b))
    return params


def _reference(x, y, t, params):
    xyt = jnp.concatenate([x, y, t], axis=1)
    ref = xyt
    for i, (w, b) in enumerate(params):
        ref = ref @ w.T + b[:, 0]
        if i < len(params) - 1:
            ref = jnp.tanh(ref)
    return ref


if __name__ == "__main__":
    D_in = 3            # cat([x, y, t], dim=1)
    H = [32, 32, 32]
    D_out = 2

    params = init_params(jax.random.PRNGKey(42), D_in, H, D_out)
    key = jax.random.PRNGKey(0)

    ok = True
    # Small case (single-tile path) and a larger case (multi-tile + tail padding path).
    for n_test in (8, 300):
        key, kx, ky, kt = jax.random.split(key, 4)
        x = jax.random.normal(kx, (n_test, 1), jnp.float32)
        y = jax.random.normal(ky, (n_test, 1), jnp.float32)
        t = jax.random.normal(kt, (n_test, 1), jnp.float32)

        out = mynet1_forward(x, y, t, params)
        jax.block_until_ready(out)

        ref = _reference(x, y, t, params)
        ok = ok and out.shape == (n_test, D_out)
        ok = ok and bool(jnp.allclose(out, ref, atol=1e-5, rtol=1e-5))

    assert ok
    print("KERNEL_OK")
</pallas_src>

<mosaic_0001>
module attributes {stable_mosaic.version = 11 : i64} {
  func.func @mlp_kernel(%arg0: i32, %arg1: memref<8x128xf32, #tpu.memory_space<vmem>>, %arg2: memref<32x8xf32, #tpu.memory_space<vmem>>, %arg3: memref<32x1xf32, #tpu.memory_space<vmem>>, %arg4: memref<32x32xf32, #tpu.memory_space<vmem>>, %arg5: memref<32x1xf32, #tpu.memory_space<vmem>>, %arg6: memref<32x32xf32, #tpu.memory_space<vmem>>, %arg7: memref<32x1xf32, #tpu.memory_space<vmem>>, %arg8: memref<2x32xf32, #tpu.memory_space<vmem>>, %arg9: memref<2x1xf32, #tpu.memory_space<vmem>>, %arg10: memref<2x128xf32, #tpu.memory_space<vmem>>) attributes {dimension_semantics = [#tpu.dimension_semantics<parallel>], iteration_bounds = array<i64: 1>, scalar_prefetch = 0 : i64, scratch_operands = 0 : i64, tpu.core_type = #tpu.core_type<tc>, window_params = [{transform_indices = @transform_0, window_bounds = array<i64: 8, 128>}, {pipeline_mode = #tpu.pipeline_mode<synchronous>, transform_indices = @transform_1, window_bounds = array<i64: 32, 8>}, {pipeline_mode = #tpu.pipeline_mode<synchronous>, transform_indices = @transform_2, window_bounds = array<i64: 32, 1>}, {pipeline_mode = #tpu.pipeline_mode<synchronous>, transform_indices = @transform_3, window_bounds = array<i64: 32, 32>}, {pipeline_mode = #tpu.pipeline_mode<synchronous>, transform_indices = @transform_4, window_bounds = array<i64: 32, 1>}, {pipeline_mode = #tpu.pipeline_mode<synchronous>, transform_indices = @transform_5, window_bounds = array<i64: 32, 32>}, {pipeline_mode = #tpu.pipeline_mode<synchronous>, transform_indices = @transform_6, window_bounds = array<i64: 32, 1>}, {pipeline_mode = #tpu.pipeline_mode<synchronous>, transform_indices = @transform_7, window_bounds = array<i64: 2, 32>}, {pipeline_mode = #tpu.pipeline_mode<synchronous>, transform_indices = @transform_8, window_bounds = array<i64: 2, 1>}, {transform_indices = @transform_9, window_bounds = array<i64: 2, 128>}]} {
    %c0 = arith.constant 0 : index
    %c0_0 = arith.constant 0 : index
    %0 = vector.load %arg2[%c0, %c0_0] : memref<32x8xf32, #tpu.memory_space<vmem>>, vector<32x8xf32>
    %c0_1 = arith.constant 0 : index
    %c0_2 = arith.constant 0 : index
    %1 = vector.load %arg1[%c0_1, %c0_2] : memref<8x128xf32, #tpu.memory_space<vmem>>, vector<8x128xf32>
    %cst = arith.constant dense<0.000000e+00> : vector<32x128xf32>
    %2 = tpu.matmul %0, %1, %cst {dimension_numbers = #tpu.dot_dimension_numbers<[1], [0], [0], [1], [0, 0, 1, 1], [], []>} : vector<32x8xf32>, vector<8x128xf32>, vector<32x128xf32> -> vector<32x128xf32>
    %c0_3 = arith.constant 0 : index
    %c0_4 = arith.constant 0 : index
    %3 = vector.load %arg3[%c0_3, %c0_4] : memref<32x1xf32, #tpu.memory_space<vmem>>, vector<32x1xf32>
    %4 = vector.broadcast %3 : vector<32x1xf32> to vector<32x128xf32>
    %5 = arith.addf %2, %4 : vector<32x128xf32>
    %6 = math.tanh %5 : vector<32x128xf32>
    %c0_5 = arith.constant 0 : index
    %c0_6 = arith.constant 0 : index
    %7 = vector.load %arg4[%c0_5, %c0_6] : memref<32x32xf32, #tpu.memory_space<vmem>>, vector<32x32xf32>
    %cst_7 = arith.constant dense<0.000000e+00> : vector<32x128xf32>
    %8 = tpu.matmul %7, %6, %cst_7 {dimension_numbers = #tpu.dot_dimension_numbers<[1], [0], [0], [1], [0, 0, 1, 1], [], []>} : vector<32x32xf32>, vector<32x128xf32>, vector<32x128xf32> -> vector<32x128xf32>
    %c0_8 = arith.constant 0 : index
    %c0_9 = arith.constant 0 : index
    %9 = vector.load %arg5[%c0_8, %c0_9] : memref<32x1xf32, #tpu.memory_space<vmem>>, vector<32x1xf32>
    %10 = vector.broadcast %9 : vector<32x1xf32> to vector<32x128xf32>
    %11 = arith.addf %8, %10 : vector<32x128xf32>
    %12 = math.tanh %11 : vector<32x128xf32>
    %c0_10 = arith.constant 0 : index
    %c0_11 = arith.constant 0 : index
    %13 = vector.load %arg6[%c0_10, %c0_11] : memref<32x32xf32, #tpu.memory_space<vmem>>, vector<32x32xf32>
    %cst_12 = arith.constant dense<0.000000e+00> : vector<32x128xf32>
    %14 = tpu.matmul %13, %12, %cst_12 {dimension_numbers = #tpu.dot_dimension_numbers<[1], [0], [0], [1], [0, 0, 1, 1], [], []>} : vector<32x32xf32>, vector<32x128xf32>, vector<32x128xf32> -> vector<32x128xf32>
    %c0_13 = arith.constant 0 : index
    %c0_14 = arith.constant 0 : index
    %15 = vector.load %arg7[%c0_13, %c0_14] : memref<32x1xf32, #tpu.memory_space<vmem>>, vector<32x1xf32>
    %16 = vector.broadcast %15 : vector<32x1xf32> to vector<32x128xf32>
    %17 = arith.addf %14, %16 : vector<32x128xf32>
    %18 = math.tanh %17 : vector<32x128xf32>
    %c0_15 = arith.constant 0 : index
    %c0_16 = arith.constant 0 : index
    %19 = vector.load %arg8[%c0_15, %c0_16] : memref<2x32xf32, #tpu.memory_space<vmem>>, vector<2x32xf32>
    %cst_17 = arith.constant dense<0.000000e+00> : vector<2x128xf32>
    %20 = tpu.matmul %19, %18, %cst_17 {dimension_numbers = #tpu.dot_dimension_numbers<[1], [0], [0], [1], [0, 0, 1, 1], [], []>} : vector<2x32xf32>, vector<32x128xf32>, vector<2x128xf32> -> vector<2x128xf32>
    %c0_18 = arith.constant 0 : index
    %c0_19 = arith.constant 0 : index
    %21 = vector.load %arg9[%c0_18, %c0_19] : memref<2x1xf32, #tpu.memory_space<vmem>>, vector<2x1xf32>
    %22 = vector.broadcast %21 : vector<2x1xf32> to vector<2x128xf32>
    %23 = arith.addf %20, %22 : vector<2x128xf32>
    %c0_20 = arith.constant 0 : index
    %c0_21 = arith.constant 0 : index
    %24 = vector.load %arg10[%c0_20, %c0_21] : memref<2x128xf32, #tpu.memory_space<vmem>>, vector<2x128xf32>
    tpu.vector_store %arg10[%c0_20, %c0_21], %23 {strides = array<i32>} : memref<2x128xf32, #tpu.memory_space<vmem>>, vector<2x128xf32>,
    return
  }
  func.func @transform_0(%arg0: i32) -> (i32, i32) {
    %c0_i32 = arith.constant 0 : i32
    %c0_i32_0 = arith.constant 0 : i32
    return %c0_i32, %arg0 : i32, i32
  }
  func.func @transform_1(%arg0: i32) -> (i32, i32) {
    %c0_i32 = arith.constant 0 : i32
    %c0_i32_0 = arith.constant 0 : i32
    %c0_i32_1 = arith.constant 0 : i32
    return %c0_i32, %c0_i32_0 : i32, i32
  }
  func.func @transform_2(%arg0: i32) -> (i32, i32) {
    %c0_i32 = arith.constant 0 : i32
    %c0_i32_0 = arith.constant 0 : i32
    %c0_i32_1 = arith.constant 0 : i32
    return %c0_i32, %c0_i32_0 : i32, i32
  }
  func.func @transform_3(%arg0: i32) -> (i32, i32) {
    %c0_i32 = arith.constant 0 : i32
    %c0_i32_0 = arith.constant 0 : i32
    %c0_i32_1 = arith.constant 0 : i32
    return %c0_i32, %c0_i32_0 : i32, i32
  }
  func.func @transform_4(%arg0: i32) -> (i32, i32) {
    %c0_i32 = arith.constant 0 : i32
    %c0_i32_0 = arith.constant 0 : i32
    %c0_i32_1 = arith.constant 0 : i32
    return %c0_i32, %c0_i32_0 : i32, i32
  }
  func.func @transform_5(%arg0: i32) -> (i32, i32) {
    %c0_i32 = arith.constant 0 : i32
    %c0_i32_0 = arith.constant 0 : i32
    %c0_i32_1 = arith.constant 0 : i32
    return %c0_i32, %c0_i32_0 : i32, i32
  }
  func.func @transform_6(%arg0: i32) -> (i32, i32) {
    %c0_i32 = arith.constant 0 : i32
    %c0_i32_0 = arith.constant 0 : i32
    %c0_i32_1 = arith.constant 0 : i32
    return %c0_i32, %c0_i32_0 : i32, i32
  }
  func.func @transform_7(%arg0: i32) -> (i32, i32) {
    %c0_i32 = arith.constant 0 : i32
    %c0_i32_0 = arith.constant 0 : i32
    %c0_i32_1 = arith.constant 0 : i32
    return %c0_i32, %c0_i32_0 : i32, i32
  }
  func.func @transform_8(%arg0: i32) -> (i32, i32) {
    %c0_i32 = arith.constant 0 : i32
    %c0_i32_0 = arith.constant 0 : i32
    %c0_i32_1 = arith.constant 0 : i32
    return %c0_i32, %c0_i32_0 : i32, i32
  }
  func.func @transform_9(%arg0: i32) -> (i32, i32) {
    %c0_i32 = arith.constant 0 : i32
    %c0_i32_0 = arith.constant 0 : i32
    return %c0_i32, %arg0 : i32, i32
  }
}

</mosaic_0001>

<llo_original>
// kernel: tpu_custom_call.1
$region0: #{tpu_custom_call.1}
  #allocation0 [shape = 'u32[]', space=smem, size = 0x4, offset = 0x4, fixed_abs, tag = 'smem constant byte address 0x4 - core index']
  #allocation1 [shape = 'u32[144,128]{1,0:T(1,128)}', space=vmem, size = 0x12000, scoped, tag = 'internal scratch']
  %s0 = inlined_call_operand.vmem [shape: f32[8,128], index: 0, kind: input, shape index: {}]
  %s1 = inlined_call_operand.vmem [shape: f32[32,8], index: 1, kind: input, shape index: {}]
  %s2 = inlined_call_operand.vmem [shape: f32[32,1], index: 2, kind: input, shape index: {}]
  %s3 = inlined_call_operand.vmem [shape: f32[32,32], index: 3, kind: input, shape index: {}]
  %s4 = inlined_call_operand.vmem [shape: f32[32,1], index: 4, kind: input, shape index: {}]
  %s5 = inlined_call_operand.vmem [shape: f32[32,32], index: 5, kind: input, shape index: {}]
  %s6 = inlined_call_operand.vmem [shape: f32[32,1], index: 6, kind: input, shape index: {}]
  %s7 = inlined_call_operand.vmem [shape: f32[2,32], index: 7, kind: input, shape index: {}]
  %s8 = inlined_call_operand.vmem [shape: f32[2,1], index: 8, kind: input, shape index: {}]
  %s9 = inlined_call_operand.hbm [shape: f32[2,128], index: 9, kind: output, shape index: {}]
  %s10 = sld [smem:[#allocation0]]
  $region46: #{tpu_custom_call.1} parent=0
    _
  %s12 = ssub.s32 1, %s10
  %s13 = scalar_select 0, %s12, %s10
  $region1: #{tpu_custom_call.1} parent=0
    #allocation2 [shape = 'u8[1024]{0}', space=vmem, size = 0x400, scoped, tag = 'output window, operand 0, single buffered']
    #allocation3 [shape = 's32[1]{0}', space=sflag, size = 0x4, scoped, tag = 'scoped memory for tpu_custom_call.1']
    %14 = vsyncpa [#allocation3], 0
    // Predicated region
    $region2: #{tpu_custom_call.1} parent=1 // pred_check
      _
    $region3: #{tpu_custom_call.1} parent=1 // pred_check_branch
      %16 = sbr.rel (0) target = $region5
    $region4: #{tpu_custom_call.1} parent=1 // pred_region
      _
    $region5: #{tpu_custom_call.1} parent=1 // pred_fallthru
      _
    // Predicated region
    $region6: #{tpu_custom_call.1} parent=1 // pred_check
      _
    $region7: #{tpu_custom_call.1} parent=1 // pred_check_branch
      %18 = sbr.rel (0) target = $region9
    $region8: #{tpu_custom_call.1} parent=1 // pred_region
      _
    $region9: #{tpu_custom_call.1} parent=1 // pred_fallthru
      _
    // Predicated region
    $region10: #{tpu_custom_call.1} parent=1 // pred_check
      _
    $region11: #{tpu_custom_call.1} parent=1 // pred_check_branch
      %20 = sbr.rel (0) target = $region13
    $region12: #{tpu_custom_call.1} parent=1 // pred_region
      _
    $region13: #{tpu_custom_call.1} parent=1 // pred_fallthru
      _
    // Predicated region
    $region14: #{tpu_custom_call.1} parent=1 // pred_check
      _
    $region15: #{tpu_custom_call.1} parent=1 // pred_check_branch
      %22 = sbr.rel (0) target = $region17
    $region16: #{tpu_custom_call.1} parent=1 // pred_region
      _
    $region17: #{tpu_custom_call.1} parent=1 // pred_fallthru
      _
    // Predicated region
    $region18: #{tpu_custom_call.1} parent=1 // pred_check
      _
    $region19: #{tpu_custom_call.1} parent=1 // pred_check_branch
      %24 = sbr.rel (0) target = $region21
    $region20: #{tpu_custom_call.1} parent=1 // pred_region
      _
    $region21: #{tpu_custom_call.1} parent=1 // pred_fallthru
      _
    // Predicated region
    $region22: #{tpu_custom_call.1} parent=1 // pred_check
      _
    $region23: #{tpu_custom_call.1} parent=1 // pred_check_branch
      %26 = sbr.rel (0) target = $region25
    $region24: #{tpu_custom_call.1} parent=1 // pred_region
      _
    $region25: #{tpu_custom_call.1} parent=1 // pred_fallthru
      _
    // Predicated region
    $region26: #{tpu_custom_call.1} parent=1 // pred_check
      _
    $region27: #{tpu_custom_call.1} parent=1 // pred_check_branch
      %28 = sbr.rel (0) target = $region29
    $region28: #{tpu_custom_call.1} parent=1 // pred_region
      _
    $region29: #{tpu_custom_call.1} parent=1 // pred_fallthru
      _
    // Predicated region
    $region30: #{tpu_custom_call.1} parent=1 // pred_check
      _
    $region31: #{tpu_custom_call.1} parent=1 // pred_check_branch
      %30 = sbr.rel (0) target = $region33
    $region32: #{tpu_custom_call.1} parent=1 // pred_region
      _
    $region33: #{tpu_custom_call.1} parent=1 // pred_fallthru
      _
    // Predicated region
    $region34: #{tpu_custom_call.1} parent=1 // pred_check
      _
    $region35: #{tpu_custom_call.1} parent=1 // pred_check_branch
      %32 = sbr.rel (0) target = $region37
    $region36: #{tpu_custom_call.1} parent=1 // pred_region
      _
    $region37: #{tpu_custom_call.1} parent=1 // pred_fallthru
      _
    %v33 = vld [vmem:[%s1] sm:$0xff]
    %v34 = vld [vmem:[%s1 + $0x8] sm:$0xff]
    %v35 = vld [vmem:[%s1 + $0x10] sm:$0xff]
    %v36 = vld [vmem:[%s1 + $0x18] sm:$0xff]
    %v37 = vld [vmem:[%s0] sm:$0xff]
    %v38 = vld [vmem:[%s2] sm:$0xff]
    %v39 = vld [vmem:[%s2 + $0x8] sm:$0xff]
    %v40 = vld [vmem:[%s2 + $0x10] sm:$0xff]
    %v41 = vld [vmem:[%s2 + $0x18] sm:$0xff]
    %43 = vset.pattern.permute.xlu0 0
    %44 = vperm.xlu0 %43, %v38
    %v45 = vpop.permute.xlu0 %44
    %48 = vset.pattern.permute.xlu0 0
    %49 = vperm.xlu0 %48, %v39
    %v50 = vpop.permute.xlu0 %49
    %53 = vset.pattern.permute.xlu0 0
    %54 = vperm.xlu0 %53, %v40
    %v55 = vpop.permute.xlu0 %54
    %58 = vset.pattern.permute.xlu0 0
    %59 = vperm.xlu0 %58, %v41
    %v60 = vpop.permute.xlu0 %59
    %vm62 = vcmask 64512
    %v64 = vsel %vm62, %v33, 0
    %v67 = vsel %vm62, %v34, 0
    %v70 = vsel %vm62, %v35, 0
    %v73 = vsel %vm62, %v36, 0
    %75 = vmatprep.subr.mxu0 0.0
    %76 = vmatpush1.msra.mxu0 %v37
    %77 = vmatprep.subr.mxu0 0.0
    %78 = vmatpush1.msra.mxu0 0.0
    %79 = vmatprep.subr.mxu0 0.0
    %80 = vmatpush1.msra.mxu0 0.0
    %81 = vmatprep.subr.mxu0 0.0
    %82 = vmatpush1.msra.mxu0 0.0
    %83 = vmatprep.subr.mxu0 0.0
    %84 = vmatpush1.msra.mxu0 0.0
    %85 = vmatprep.subr.mxu0 0.0
    %86 = vmatpush1.msra.mxu0 0.0
    %87 = vmatprep.subr.mxu0 0.0
    %88 = vmatpush1.msra.mxu0 0.0
    %89 = vmatprep.subr.mxu0 0.0
    %90 = vmatpush1.msra.mxu0 0.0
    %91 = vmatprep.subr.mxu0 0.0
    %92 = vmatpush1.msra.mxu0 0.0
    %93 = vmatprep.subr.mxu0 0.0
    %94 = vmatpush1.msra.mxu0 0.0
    %95 = vmatprep.subr.mxu0 0.0
    %96 = vmatpush1.msra.mxu0 0.0
    %97 = vmatprep.subr.mxu0 0.0
    %98 = vmatpush1.msra.mxu0 0.0
    %99 = vmatprep.subr.mxu0 0.0
    %100 = vmatpush1.msra.mxu0 0.0
    %101 = vmatprep.subr.mxu0 0.0
    %102 = vmatpush1.msra.mxu0 0.0
    %103 = vmatprep.subr.mxu0 0.0
    %104 = vmatpush1.msra.mxu0 0.0
    %105 = vmatprep.subr.mxu0 0.0
    %106 = vmatpush1.msra.mxu0 0.0
    %107 = vmatprep.subr.mxu0 0.0
    %108 = vmatpush1.msra.mxu0 0.0
    %109 = vmatprep.subr.mxu0 0.0
    %110 = vmatpush1.msra.mxu0 0.0
    %111 = vmatprep.subr.mxu0 0.0
    %112 = vmatpush1.msra.mxu0 0.0
    %113 = vmatprep.subr.mxu0 0.0
    %114 = vmatpush1.msra.mxu0 0.0
    %115 = vmatprep.subr.mxu0 0.0
    %116 = vmatpush1.msra.mxu0 0.0
    %117 = vmatprep.subr.mxu0 0.0
    %118 = vmatpush1.msra.mxu0 0.0
    %119 = vmatprep.subr.mxu0 0.0
    %120 = vmatpush1.msra.mxu0 0.0
    %121 = vmatprep.subr.mxu0 0.0
    %122 = vmatpush1.msra.mxu0 0.0
    %123 = vmatprep.subr.mxu0 0.0
    %124 = vmatpush1.msra.mxu0 0.0
    %125 = vmatprep.subr.mxu0 0.0
    %126 = vmatpush1.msra.mxu0 0.0
    %127 = vmatprep.subr.mxu0 0.0
    %128 = vmatpush1.msra.mxu0 0.0
    %129 = vmatprep.subr.mxu0 0.0
    %130 = vmatpush1.msra.mxu0 0.0
    %131 = vmatprep.subr.mxu0 0.0
    %132 = vmatpush1.msra.mxu0 0.0
    %133 = vmatprep.subr.mxu0 0.0
    %134 = vmatpush1.msra.mxu0 0.0
    %135 = vmatprep.subr.mxu0 0.0
    %136 = vmatpush1.msra.mxu0 0.0
    %137 = vmatprep.subr.mxu0 0.0
    %138 = vmatpush1.msra.mxu0 0.0
    %139 = vmatprep.mubr.f32.mxu0 0.0
    %140 = vmatmul.mubr.f32.gmra.mrb[0].mxu0 %v64
    %v141 = vpop.f32.mrb[0].mxu0
    %v142 = vadd.f32 %v45, %v141
    %v143 = vpop.f32.mrb[0].mxu0
    %144 = vmatprep.mubr.f32.mxu0 0.0
    %145 = vmatmul.mubr.f32.gmra.mrb[0].mxu0 %v67
    %v146 = vpop.f32.mrb[0].mxu0
    %v147 = vadd.f32 %v50, %v146
    %v148 = vpop.f32.mrb[0].mxu0
    %149 = vmatprep.mubr.f32.mxu0 0.0
    %150 = vmatmul.mubr.f32.gmra.mrb[0].mxu0 %v70
    %v151 = vpop.f32.mrb[0].mxu0
    %v152 = vadd.f32 %v55, %v151
    %v153 = vpop.f32.mrb[0].mxu0
    %154 = vmatprep.mubr.f32.mxu0 0.0
    %155 = vmatmul.mubr.f32.gmra.mrb[0].mxu0 %v73
    %v156 = vpop.f32.mrb[0].mxu0
    %v157 = vadd.f32 %v60, %v156
    %v158 = vpop.f32.mrb[0].mxu0
    %159 = vdwg.mxu0
    %v160 = vtanh.pop %v142
    %v161 = vtanh.pop %v147
    %v162 = vtanh.pop %v152
    %v163 = vtanh.pop %v157
    %v164 = vld [vmem:[%s3] sm:$0xff]
    %v165 = vld [vmem:[%s3 + $0x8] sm:$0xff]
    %v166 = vld [vmem:[%s3 + $0x10] sm:$0xff]
    %v167 = vld [vmem:[%s3 + $0x18] sm:$0xff]
    %v168 = vld [vmem:[%s4] sm:$0xff]
    %v169 = vld [vmem:[%s4 + $0x8] sm:$0xff]
    %v170 = vld [vmem:[%s4 + $0x10] sm:$0xff]
    %v171 = vld [vmem:[%s4 + $0x18] sm:$0xff]
    %173 = vset.pattern.permute.xlu0 0
    %174 = vperm.xlu0 %173, %v168
    %v175 = vpop.permute.xlu0 %174
    %178 = vset.pattern.permute.xlu0 0
    %179 = vperm.xlu0 %178, %v169
    %v180 = vpop.permute.xlu0 %179
    %183 = vset.pattern.permute.xlu0 0
    %184 = vperm.xlu0 %183, %v170
    %v185 = vpop.permute.xlu0 %184
    %188 = vset.pattern.permute.xlu0 0
    %189 = vperm.xlu0 %188, %v171
    %v190 = vpop.permute.xlu0 %189
    %vm192 = vcmask 261120
    %v194 = vsel %vm192, %v164, 0
    %v197 = vsel %vm192, %v165, 0
    %v200 = vsel %vm192, %v166, 0
    %v203 = vsel %vm192, %v167, 0
    %205 = vmatprep.subr.mxu0 0.0
    %206 = vmatpush1.msra.mxu0 %v160
    %207 = vmatprep.subr.mxu0 0.0
    %208 = vmatpush1.msra.mxu0 %v161
    %209 = vmatprep.subr.mxu0 0.0
    %210 = vmatpush1.msra.mxu0 %v162
    %211 = vmatprep.subr.mxu0 0.0
    %212 = vmatpush1.msra.mxu0 %v163
    %213 = vmatprep.subr.mxu0 0.0
    %214 = vmatpush1.msra.mxu0 0.0
    %215 = vmatprep.subr.mxu0 0.0
    %216 = vmatpush1.msra.mxu0 0.0
    %217 = vmatprep.subr.mxu0 0.0
    %218 = vmatpush1.msra.mxu0 0.0
    %219 = vmatprep.subr.mxu0 0.0
    %220 = vmatpush1.msra.mxu0 0.0
    %221 = vmatprep.subr.mxu0 0.0
    %222 = vmatpush1.msra.mxu0 0.0
    %223 = vmatprep.subr.mxu0 0.0
    %224 = vmatpush1.msra.mxu0 0.0
    %225 = vmatprep.subr.mxu0 0.0
    %226 = vmatpush1.msra.mxu0 0.0
    %227 = vmatprep.subr.mxu0 0.0
    %228 = vmatpush1.msra.mxu0 0.0
    %229 = vmatprep.subr.mxu0 0.0
    %230 = vmatpush1.msra.mxu0 0.0
    %231 = vmatprep.subr.mxu0 0.0
    %232 = vmatpush1.msra.mxu0 0.0
    %233 = vmatprep.subr.mxu0 0.0
    %234 = vmatpush1.msra.mxu0 0.0
    %235 = vmatprep.subr.mxu0 0.0
    %236 = vmatpush1.msra.mxu0 0.0
    %237 = vmatprep.subr.mxu0 0.0
    %238 = vmatpush1.msra.mxu0 0.0
    %239 = vmatprep.subr.mxu0 0.0
    %240 = vmatpush1.msra.mxu0 0.0
    %241 = vmatprep.subr.mxu0 0.0
    %242 = vmatpush1.msra.mxu0 0.0
    %243 = vmatprep.subr.mxu0 0.0
    %244 = vmatpush1.msra.mxu0 0.0
    %245 = vmatprep.subr.mxu0 0.0
    %246 = vmatpush1.msra.mxu0 0.0
    %247 = vmatprep.subr.mxu0 0.0
    %248 = vmatpush1.msra.mxu0 0.0
    %249 = vmatprep.subr.mxu0 0.0
    %250 = vmatpush1.msra.mxu0 0.0
    %251 = vmatprep.subr.mxu0 0.0
    %252 = vmatpush1.msra.mxu0 0.0
    %253 = vmatprep.subr.mxu0 0.0
    %254 = vmatpush1.msra.mxu0 0.0
    %255 = vmatprep.subr.mxu0 0.0
    %256 = vmatpush1.msra.mxu0 0.0
    %257 = vmatprep.subr.mxu0 0.0
    %258 = vmatpush1.msra.mxu0 0.0
    %259 = vmatprep.subr.mxu0 0.0
    %260 = vmatpush1.msra.mxu0 0.0
    %261 = vmatprep.subr.mxu0 0.0
    %262 = vmatpush1.msra.mxu0 0.0
    %263 = vmatprep.subr.mxu0 0.0
    %264 = vmatpush1.msra.mxu0 0.0
    %265 = vmatprep.subr.mxu0 0.0
    %266 = vmatpush1.msra.mxu0 0.0
    %267 = vmatprep.subr.mxu0 0.0
    %268 = vmatpush1.msra.mxu0 0.0
    %269 = vmatprep.mubr.f32.mxu0 0.0
    %270 = vmatmul.mubr.f32.gmra.mrb[0].mxu0 %v194
    %v271 = vpop.f32.mrb[0].mxu0
    %v272 = vadd.f32 %v175, %v271
    %v273 = vpop.f32.mrb[0].mxu0
    %274 = vmatprep.mubr.f32.mxu0 0.0
    %275 = vmatmul.mubr.f32.gmra.mrb[0].mxu0 %v197
    %v276 = vpop.f32.mrb[0].mxu0
    %v277 = vadd.f32 %v180, %v276
    %v278 = vpop.f32.mrb[0].mxu0
    %279 = vmatprep.mubr.f32.mxu0 0.0
    %280 = vmatmul.mubr.f32.gmra.mrb[0].mxu0 %v200
    %v281 = vpop.f32.mrb[0].mxu0
    %v282 = vadd.f32 %v185, %v281
    %v283 = vpop.f32.mrb[0].mxu0
    %284 = vmatprep.mubr.f32.mxu0 0.0
    %285 = vmatmul.mubr.f32.gmra.mrb[0].mxu0 %v203
    %v286 = vpop.f32.mrb[0].mxu0
    %v287 = vadd.f32 %v190, %v286
    %v288 = vpop.f32.mrb[0].mxu0
    %289 = vdwg.mxu0
    %v290 = vtanh.pop %v272
    %v291 = vtanh.pop %v277
    %v292 = vtanh.pop %v282
    %v293 = vtanh.pop %v287
    %v294 = vld [vmem:[%s5] sm:$0xff]
    %v295 = vld [vmem:[%s5 + $0x8] sm:$0xff]
    %v296 = vld [vmem:[%s5 + $0x10] sm:$0xff]
    %v297 = vld [vmem:[%s5 + $0x18] sm:$0xff]
    %v298 = vld [vmem:[%s6] sm:$0xff]
    %v299 = vld [vmem:[%s6 + $0x8] sm:$0xff]
    %v300 = vld [vmem:[%s6 + $0x10] sm:$0xff]
    %v301 = vld [vmem:[%s6 + $0x18] sm:$0xff]
    %303 = vset.pattern.permute.xlu0 0
    %304 = vperm.xlu0 %303, %v298
    %v305 = vpop.permute.xlu0 %304
    %308 = vset.pattern.permute.xlu0 0
    %309 = vperm.xlu0 %308, %v299
    %v310 = vpop.permute.xlu0 %309
    %313 = vset.pattern.permute.xlu0 0
    %314 = vperm.xlu0 %313, %v300
    %v315 = vpop.permute.xlu0 %314
    %318 = vset.pattern.permute.xlu0 0
    %319 = vperm.xlu0 %318, %v301
    %v320 = vpop.permute.xlu0 %319
    %v323 = vsel %vm192, %v294, 0
    %v326 = vsel %vm192, %v295, 0
    %v329 = vsel %vm192, %v296, 0
    %v332 = vsel %vm192, %v297, 0
    %334 = vmatprep.subr.mxu0 0.0
    %335 = vmatpush1.msra.mxu0 %v290
    %336 = vmatprep.subr.mxu0 0.0
    %337 = vmatpush1.msra.mxu0 %v291
    %338 = vmatprep.subr.mxu0 0.0
    %339 = vmatpush1.msra.mxu0 %v292
    %340 = vmatprep.subr.mxu0 0.0
    %341 = vmatpush1.msra.mxu0 %v293
    %342 = vmatprep.subr.mxu0 0.0
    %343 = vmatpush1.msra.mxu0 0.0
    %344 = vmatprep.subr.mxu0 0.0
    %345 = vmatpush1.msra.mxu0 0.0
    %346 = vmatprep.subr.mxu0 0.0
    %347 = vmatpush1.msra.mxu0 0.0
    %348 = vmatprep.subr.mxu0 0.0
    %349 = vmatpush1.msra.mxu0 0.0
    %350 = vmatprep.subr.mxu0 0.0
    %351 = vmatpush1.msra.mxu0 0.0
    %352 = vmatprep.subr.mxu0 0.0
    %353 = vmatpush1.msra.mxu0 0.0
    %354 = vmatprep.subr.mxu0 0.0
    %355 = vmatpush1.msra.mxu0 0.0
    %356 = vmatprep.subr.mxu0 0.0
    %357 = vmatpush1.msra.mxu0 0.0
    %358 = vmatprep.subr.mxu0 0.0
    %359 = vmatpush1.msra.mxu0 0.0
    %360 = vmatprep.subr.mxu0 0.0
    %361 = vmatpush1.msra.mxu0 0.0
    %362 = vmatprep.subr.mxu0 0.0
    %363 = vmatpush1.msra.mxu0 0.0
    %364 = vmatprep.subr.mxu0 0.0
    %365 = vmatpush1.msra.mxu0 0.0
    %366 = vmatprep.subr.mxu0 0.0
    %367 = vmatpush1.msra.mxu0 0.0
    %368 = vmatprep.subr.mxu0 0.0
    %369 = vmatpush1.msra.mxu0 0.0
    %370 = vmatprep.subr.mxu0 0.0
    %371 = vmatpush1.msra.mxu0 0.0
    %372 = vmatprep.subr.mxu0 0.0
    %373 = vmatpush1.msra.mxu0 0.0
    %374 = vmatprep.subr.mxu0 0.0
    %375 = vmatpush1.msra.mxu0 0.0
    %376 = vmatprep.subr.mxu0 0.0
    %377 = vmatpush1.msra.mxu0 0.0
    %378 = vmatprep.subr.mxu0 0.0
    %379 = vmatpush1.msra.mxu0 0.0
    %380 = vmatprep.subr.mxu0 0.0
    %381 = vmatpush1.msra.mxu0 0.0
    %382 = vmatprep.subr.mxu0 0.0
    %383 = vmatpush1.msra.mxu0 0.0
    %384 = vmatprep.subr.mxu0 0.0
    %385 = vmatpush1.msra.mxu0 0.0
    %386 = vmatprep.subr.mxu0 0.0
    %387 = vmatpush1.msra.mxu0 0.0
    %388 = vmatprep.subr.mxu0 0.0
    %389 = vmatpush1.msra.mxu0 0.0
    %390 = vmatprep.subr.mxu0 0.0
    %391 = vmatpush1.msra.mxu0 0.0
    %392 = vmatprep.subr.mxu0 0.0
    %393 = vmatpush1.msra.mxu0 0.0
    %394 = vmatprep.subr.mxu0 0.0
    %395 = vmatpush1.msra.mxu0 0.0
    %396 = vmatprep.subr.mxu0 0.0
    %397 = vmatpush1.msra.mxu0 0.0
    %398 = vmatprep.mubr.f32.mxu0 0.0
    %399 = vmatmul.mubr.f32.gmra.mrb[0].mxu0 %v323
    %v400 = vpop.f32.mrb[0].mxu0
    %v401 = vadd.f32 %v305, %v400
    %v402 = vpop.f32.mrb[0].mxu0
    %403 = vmatprep.mubr.f32.mxu0 0.0
    %404 = vmatmul.mubr.f32.gmra.mrb[0].mxu0 %v326
    %v405 = vpop.f32.mrb[0].mxu0
    %v406 = vadd.f32 %v310, %v405
    %v407 = vpop.f32.mrb[0].mxu0
    %408 = vmatprep.mubr.f32.mxu0 0.0
    %409 = vmatmul.mubr.f32.gmra.mrb[0].mxu0 %v329
    %v410 = vpop.f32.mrb[0].mxu0
    %v411 = vadd.f32 %v315, %v410
    %v412 = vpop.f32.mrb[0].mxu0
    %413 = vmatprep.mubr.f32.mxu0 0.0
    %414 = vmatmul.mubr.f32.gmra.mrb[0].mxu0 %v332
    %v415 = vpop.f32.mrb[0].mxu0
    %v416 = vadd.f32 %v320, %v415
    %v417 = vpop.f32.mrb[0].mxu0
    %418 = vdwg.mxu0
    %v419 = vtanh.pop %v401
    %v420 = vtanh.pop %v406
    %v421 = vtanh.pop %v411
    %v422 = vtanh.pop %v416
    %v423 = vld [vmem:[%s7] sm:$0x3]
    %v424 = vld [vmem:[%s8] sm:$0x3]
    %426 = vset.pattern.permute.xlu0 0
    %427 = vperm.xlu0 %426, %v424
    %v428 = vpop.permute.xlu0 %427
    %v431 = vsel %vm192, %v423, 0
    %433 = vmatprep.subr.mxu0 0.0
    %434 = vmatpush1.msra.mxu0 %v419
    %435 = vmatprep.subr.mxu0 0.0
    %436 = vmatpush1.msra.mxu0 %v420
    %437 = vmatprep.subr.mxu0 0.0
    %438 = vmatpush1.msra.mxu0 %v421
    %439 = vmatprep.subr.mxu0 0.0
    %440 = vmatpush1.msra.mxu0 %v422
    %441 = vmatprep.subr.mxu0 0.0
    %442 = vmatpush1.msra.mxu0 0.0
    %443 = vmatprep.subr.mxu0 0.0
    %444 = vmatpush1.msra.mxu0 0.0
    %445 = vmatprep.subr.mxu0 0.0
    %446 = vmatpush1.msra.mxu0 0.0
    %447 = vmatprep.subr.mxu0 0.0
    %448 = vmatpush1.msra.mxu0 0.0
    %449 = vmatprep.subr.mxu0 0.0
    %450 = vmatpush1.msra.mxu0 0.0
    %451 = vmatprep.subr.mxu0 0.0
    %452 = vmatpush1.msra.mxu0 0.0
    %453 = vmatprep.subr.mxu0 0.0
    %454 = vmatpush1.msra.mxu0 0.0
    %455 = vmatprep.subr.mxu0 0.0
    %456 = vmatpush1.msra.mxu0 0.0
    %457 = vmatprep.subr.mxu0 0.0
    %458 = vmatpush1.msra.mxu0 0.0
    %459 = vmatprep.subr.mxu0 0.0
    %460 = vmatpush1.msra.mxu0 0.0
    %461 = vmatprep.subr.mxu0 0.0
    %462 = vmatpush1.msra.mxu0 0.0
    %463 = vmatprep.subr.mxu0 0.0
    %464 = vmatpush1.msra.mxu0 0.0
    %465 = vmatprep.subr.mxu0 0.0
    %466 = vmatpush1.msra.mxu0 0.0
    %467 = vmatprep.subr.mxu0 0.0
    %468 = vmatpush1.msra.mxu0 0.0
    %469 = vmatprep.subr.mxu0 0.0
    %470 = vmatpush1.msra.mxu0 0.0
    %471 = vmatprep.subr.mxu0 0.0
    %472 = vmatpush1.msra.mxu0 0.0
    %473 = vmatprep.subr.mxu0 0.0
    %474 = vmatpush1.msra.mxu0 0.0
    %475 = vmatprep.subr.mxu0 0.0
    %476 = vmatpush1.msra.mxu0 0.0
    %477 = vmatprep.subr.mxu0 0.0
    %478 = vmatpush1.msra.mxu0 0.0
    %479 = vmatprep.subr.mxu0 0.0
    %480 = vmatpush1.msra.mxu0 0.0
    %481 = vmatprep.subr.mxu0 0.0
    %482 = vmatpush1.msra.mxu0 0.0
    %483 = vmatprep.subr.mxu0 0.0
    %484 = vmatpush1.msra.mxu0 0.0
    %485 = vmatprep.subr.mxu0 0.0
    %486 = vmatpush1.msra.mxu0 0.0
    %487 = vmatprep.subr.mxu0 0.0
    %488 = vmatpush1.msra.mxu0 0.0
    %489 = vmatprep.subr.mxu0 0.0
    %490 = vmatpush1.msra.mxu0 0.0
    %491 = vmatprep.subr.mxu0 0.0
    %492 = vmatpush1.msra.mxu0 0.0
    %493 = vmatprep.subr.mxu0 0.0
    %494 = vmatpush1.msra.mxu0 0.0
    %495 = vmatprep.subr.mxu0 0.0
    %496 = vmatpush1.msra.mxu0 0.0
    %497 = vmatprep.mubr.f32.mxu0 0.0
    %498 = vmatmul.mubr.f32.gmra.mrb[0].mxu0 %v431
    %v499 = vpop.f32.mrb[0].mxu0
    %v500 = vadd.f32 %v428, %v499
    %v501 = vpop.f32.mrb[0].mxu0
    %502 = vdwg.mxu0
    %503 = vst [vmem:[#allocation2] sm:$0x3] %v500
    // Predicated region
    $region38: #{tpu_custom_call.1} parent=1 // pred_check
      _
    $region39: #{tpu_custom_call.1} parent=1 // pred_check_branch
      %505 = sbr.rel (0) target = $region41
    $region40: #{tpu_custom_call.1} parent=1 // pred_region
      %s507 = ssub.s32 32, 32
      %508 = vsyncadd [#allocation3], %s507
      %s510 = sshll.u32 [#allocation2], 4
      %s511 = int_to_ptr.vmem [resolvable:$true] %s510
      %513 = dma.vmem_to_hbm [thread:$0]  %s511, 32, %s9, [#allocation3]
    $region41: #{tpu_custom_call.1} parent=1 // pred_fallthru
      _
    // Predicated region
    $region42: #{tpu_custom_call.1} parent=1 // pred_check
      _
    $region43: #{tpu_custom_call.1} parent=1 // pred_check_branch
      %515 = sbr.rel (0) target = $region45
    $region44: #{tpu_custom_call.1} parent=1 // pred_region
      %516 = dma.done [#allocation3], 32
    $region45: #{tpu_custom_call.1} parent=1 // pred_fallthru
      _
    %517 = vsyncpa [#allocation3], 1

</llo_original>
